<compile_context>
chip_gen: v7x
topology: tpu7x:2x2x1
jax: 0.10.0
libtpu: 0.0.40
codegen_flags: <defaults>
</compile_context>

<pallas_src>
import jax
import jax.numpy as jnp
from jax.experimental import pallas as pl
from jax.experimental.pallas import tpu as pltpu


# ---------------------------------------------------------------------------
# VMEM budget: derive from the hardware when possible (v7x has only 64 MiB).
# ---------------------------------------------------------------------------
def _vmem_limit_bytes():
    try:
        cap = int(pltpu.get_tpu_info().vmem_capacity_bytes)
    except Exception:
        cap = 64 * 1024 * 1024
    return int(min((cap * 3) // 4, 96 * 1024 * 1024))


# ---------------------------------------------------------------------------
# Kernel 1: QKV projection.  x_tile @ w_col_tile^T, weight in native
# (3*inner, D) layout; grid = (B, col, seq) so the weight column block is
# resident across the sequence loop.
# ---------------------------------------------------------------------------
def _qkv_proj_kernel(x_ref, w_ref, o_ref):
    # x_ref: (bn, D), w_ref: (bc, D), o_ref: (bn, bc);  o = x @ w^T
    o_ref[...] = jax.lax.dot_general(
        x_ref[...], w_ref[...],
        (((1,), (1,)), ((), ())),
        preferred_element_type=jnp.float32,
    ).astype(o_ref.dtype)


# ---------------------------------------------------------------------------
# Kernel 2: K MultiHeadRMSNorm pre-pass (gamma_k * sqrt(dh) folded in), so
# the attention kernel consumes already-normalized K.
# ---------------------------------------------------------------------------
def _k_rmsnorm_kernel(k_ref, gk_ref, o_ref):
    # k_ref: (bn, dh), gk_ref: (1, dh)
    dh = k_ref.shape[-1]
    kf = k_ref[...].astype(jnp.float32)
    ssq = jnp.maximum(jnp.sum(kf * kf, axis=-1, keepdims=True), 1e-24)
    # max(sqrt(x), 1e-12) == sqrt(max(x, 1e-24))  -> matches F.normalize eps.
    kn = kf * jax.lax.rsqrt(ssq)
    # Fold gamma_k and the +sqrt(dh) of the (rms_scale, sm_scale) pair here.
    kn = kn * (gk_ref[...].astype(jnp.float32) * (float(dh) ** 0.5))
    o_ref[...] = kn.astype(o_ref.dtype)


# ---------------------------------------------------------------------------
# Kernel 3: flash attention (pure).  Q RMSNorm is hoisted: computed once per
# q-tile at ki == 0 into a VMEM scratch (MXU input dtype) and reused for all
# k-tiles.  No explicit softmax scale (folded into the q/k normalization).
# grid = (B, H, q-tiles, k-tiles); k-tile axis is the online-softmax
# reduction ("arbitrary"), everything else "parallel".
# ---------------------------------------------------------------------------
def _attn_kernel(q_ref, k_ref, v_ref, gq_ref, o_ref,
                 qn_sc, m_sc, l_sc, acc_sc):
    ki = pl.program_id(3)

    @pl.when(ki == 0)
    def _():
        # Hoisted q MultiHeadRMSNorm: normalize(q) * gamma_q  (no sqrt(dh) —
        # it cancels against the softmax scale).
        qf = q_ref[...].astype(jnp.float32)
        ssq = jnp.maximum(jnp.sum(qf * qf, axis=-1, keepdims=True), 1e-24)
        qn = qf * jax.lax.rsqrt(ssq) * gq_ref[...].astype(jnp.float32)
        qn_sc[...] = qn.astype(qn_sc.dtype)
        m_sc[...] = jnp.full(m_sc.shape, -jnp.inf, jnp.float32)
        l_sc[...] = jnp.zeros(l_sc.shape, jnp.float32)
        acc_sc[...] = jnp.zeros(acc_sc.shape, jnp.float32)

    # Scores: (bq, bk), f32 accumulate, MXU operands in the input dtype.
    s = jax.lax.dot_general(
        qn_sc[...], k_ref[...],
        (((1,), (1,)), ((), ())),
        preferred_element_type=jnp.float32)

    # --- online softmax update ---
    m_prev = m_sc[...]
    m_new = jnp.maximum(m_prev, jnp.max(s, axis=-1, keepdims=True))
    alpha = jnp.exp(m_prev - m_new)
    p = jnp.exp(s - m_new)
    l_sc[...] = alpha * l_sc[...] + jnp.sum(p, axis=-1, keepdims=True)
    pv = jax.lax.dot_general(
        p.astype(v_ref.dtype), v_ref[...],
        (((1,), (0,)), ((), ())),
        preferred_element_type=jnp.float32)
    acc_sc[...] = alpha * acc_sc[...] + pv
    m_sc[...] = m_new

    @pl.when(ki == pl.num_programs(3) - 1)
    def _():
        inv_l = pl.reciprocal(l_sc[...], approx=True)
        o_ref[...] = (acc_sc[...] * inv_l).astype(o_ref.dtype)


# ---------------------------------------------------------------------------
# Wrapper
# ---------------------------------------------------------------------------
def dit_attention(x, w_qkv, gamma_q, gamma_k, heads,
                  *, block_n=512, block_q=256, block_k=512, block_c=1536):
    """DiTAttention forward.

    x: (B, N, dim); w_qkv: (3*inner, dim) (PyTorch Linear layout, no bias);
    gamma_q / gamma_k: (heads, 1, dim_head).  Returns (B, N, inner).
    """
    B, N, D = x.shape
    three_inner = w_qkv.shape[0]
    inner = three_inner // 3
    dh = inner // heads
    itemsize = jnp.dtype(x.dtype).itemsize

    bn = min(block_n, N)
    bq = min(block_q, N)
    bk = min(block_k, N)
    bc = min(block_c, three_inner)
    assert N % bn == 0 and N % bq == 0 and N % bk == 0, "seq must tile evenly"
    assert three_inner % bc == 0, "3*inner must tile evenly by block_c"

    vmem_cap = _vmem_limit_bytes()

    # ---- Kernel 1: QKV projection (native weight layout, column-tiled). ----
    qkv = pl.pallas_call(
        _qkv_proj_kernel,
        out_shape=jax.ShapeDtypeStruct((B, N, three_inner), x.dtype),
        grid_spec=pltpu.PrefetchScalarGridSpec(
            num_scalar_prefetch=0,
            grid=(B, three_inner // bc, N // bn),
            in_specs=[
                pl.BlockSpec((None, bn, D), lambda b, c, n: (b, n, 0)),
                pl.BlockSpec((bc, D), lambda b, c, n: (c, 0)),
            ],
            out_specs=pl.BlockSpec((None, bn, bc), lambda b, c, n: (b, n, c)),
        ),
        compiler_params=pltpu.CompilerParams(
            dimension_semantics=("parallel", "parallel", "parallel"),
            vmem_limit_bytes=vmem_cap),
        cost_estimate=pl.CostEstimate(
            flops=int(2 * B * N * D * three_inner),
            transcendentals=0,
            bytes_accessed=int(itemsize * (B * N * D * (three_inner // bc)
                                           + three_inner * D
                                           + B * N * three_inner))),
    )(x, w_qkv)

    # chunk(3, dim=-1) and 'b n (h d) -> b h n d'  (layout only, done in XLA).
    q, k, v = jnp.split(qkv, 3, axis=-1)

    def to_heads(t):
        return t.reshape(B, N, heads, dh).transpose(0, 2, 1, 3)

    q, k, v = to_heads(q), to_heads(k), to_heads(v)

    # ---- Kernel 2: K RMSNorm pre-pass (gamma_k * sqrt(dh) folded in). ----
    kn = pl.pallas_call(
        _k_rmsnorm_kernel,
        out_shape=jax.ShapeDtypeStruct((B, heads, N, dh), x.dtype),
        grid_spec=pltpu.PrefetchScalarGridSpec(
            num_scalar_prefetch=0,
            grid=(B, heads, N // bn),
            in_specs=[
                pl.BlockSpec((None, None, bn, dh),
                             lambda b, h, n: (b, h, n, 0)),
                pl.BlockSpec((None, 1, dh), lambda b, h, n: (h, 0, 0)),
            ],
            out_specs=pl.BlockSpec((None, None, bn, dh),
                                   lambda b, h, n: (b, h, n, 0)),
        ),
        compiler_params=pltpu.CompilerParams(
            dimension_semantics=("parallel", "parallel", "parallel"),
            vmem_limit_bytes=vmem_cap),
        cost_estimate=pl.CostEstimate(
            flops=int(3 * B * heads * N * dh),
            transcendentals=int(B * heads * N),
            bytes_accessed=int(itemsize * 2 * B * heads * N * dh)),
    )(k, gamma_k)

    # ---- Kernel 3: flash attention with hoisted q-RMSNorm. ----
    out = pl.pallas_call(
        _attn_kernel,
        out_shape=jax.ShapeDtypeStruct((B, heads, N, dh), x.dtype),
        grid_spec=pltpu.PrefetchScalarGridSpec(
            num_scalar_prefetch=0,
            grid=(B, heads, N // bq, N // bk),
            in_specs=[
                pl.BlockSpec((None, None, bq, dh),
                             lambda b, h, qi, ki: (b, h, qi, 0)),
                pl.BlockSpec((None, None, bk, dh),
                             lambda b, h, qi, ki: (b, h, ki, 0)),
                pl.BlockSpec((None, None, bk, dh),
                             lambda b, h, qi, ki: (b, h, ki, 0)),
                pl.BlockSpec((None, 1, dh), lambda b, h, qi, ki: (h, 0, 0)),
            ],
            out_specs=pl.BlockSpec((None, None, bq, dh),
                                   lambda b, h, qi, ki: (b, h, qi, 0)),
            scratch_shapes=[
                pltpu.VMEM((bq, dh), x.dtype),       # normalized q tile
                pltpu.VMEM((bq, 1), jnp.float32),    # running max  m
                pltpu.VMEM((bq, 1), jnp.float32),    # running sum  l
                pltpu.VMEM((bq, dh), jnp.float32),   # output accumulator
            ],
        ),
        compiler_params=pltpu.CompilerParams(
            dimension_semantics=("parallel", "parallel", "parallel",
                                 "arbitrary"),
            vmem_limit_bytes=vmem_cap),
        cost_estimate=pl.CostEstimate(
            flops=int(4 * B * heads * N * N * dh),
            transcendentals=int(B * heads * N * N),
            bytes_accessed=int(itemsize * B * heads * N * dh
                               * (2 + 2 * (N // bq)))),
    )(q, kn, v, gamma_q)

    # 'b h n d -> b n (h d)'   (layout only, XLA)
    # TODO(synk): write the attention output directly in (B, N, H, dh) layout
    # once a non-(8,128)-aligned head block is confirmed safe on all targets.
    return out.transpose(0, 2, 1, 3).reshape(B, N, inner)


# ---------------------------------------------------------------------------
# Pure-JAX reference mirroring the PyTorch forward.
# ---------------------------------------------------------------------------
def dit_attention_ref(x, w_qkv, gamma_q, gamma_k, heads):
    B, N, _ = x.shape
    inner = w_qkv.shape[0] // 3
    dh = inner // heads
    qkv = x @ w_qkv.T
    q, k, v = jnp.split(qkv, 3, axis=-1)

    def to_heads(t):
        return t.reshape(B, N, heads, dh).transpose(0, 2, 1, 3)

    q, k, v = to_heads(q), to_heads(k), to_heads(v)

    def rmsnorm(t, g):
        nrm = jnp.maximum(jnp.sqrt(jnp.sum(t * t, -1, keepdims=True)), 1e-12)
        return (t / nrm) * g[None] * (dh ** 0.5)

    q = rmsnorm(q, gamma_q)
    k = rmsnorm(k, gamma_k)
    s = jnp.einsum('bhqd,bhkd->bhqk', q, k) * (dh ** -0.5)
    p = jax.nn.softmax(s, axis=-1)
    o = jnp.einsum('bhqk,bhkd->bhqd', p, v)
    return o.transpose(0, 2, 1, 3).reshape(B, N, inner)


if __name__ == "__main__":
    key = jax.random.PRNGKey(0)
    B, N = 2, 16
    heads, dim_head = 2, 32
    dim = 64
    inner = heads * dim_head

    ks = jax.random.split(key, 4)
    x = jax.random.normal(ks[0], (B, N, dim), dtype=jnp.float32)
    # PyTorch Linear layout: (out_features, in_features), no bias.
    w_qkv = jax.random.normal(ks[1], (3 * inner, dim), dtype=jnp.float32) * 0.05
    gamma_q = 1.0 + 0.1 * jax.random.normal(ks[2], (heads, 1, dim_head),
                                            dtype=jnp.float32)
    gamma_k = 1.0 + 0.1 * jax.random.normal(ks[3], (heads, 1, dim_head),
                                            dtype=jnp.float32)

    # Small blocks so the q-tile / k-tile / seq-tile loops are all exercised.
    out = dit_attention(x, w_qkv, gamma_q, gamma_k, heads,
                        block_n=8, block_q=8, block_k=8)
    out = jax.block_until_ready(out)

    ref = dit_attention_ref(x, w_qkv, gamma_q, gamma_k, heads)
    assert out.shape == (B, N, inner)
    assert jnp.allclose(out, ref, atol=1e-2, rtol=1e-2), "mismatch vs reference"

    print("KERNEL_OK")
</pallas_src>

<mosaic_0001>
module attributes {stable_mosaic.version = 11 : i64} {
  func.func @_qkv_proj_kernel(%arg0: i32, %arg1: i32, %arg2: i32, %arg3: memref<1x8x64xf32, #tpu.memory_space<vmem>>, %arg4: memref<192x64xf32, #tpu.memory_space<vmem>>, %arg5: memref<1x8x192xf32, #tpu.memory_space<vmem>>) attributes {dimension_semantics = [#tpu.dimension_semantics<parallel>, #tpu.dimension_semantics<parallel>, #tpu.dimension_semantics<parallel>], iteration_bounds = array<i64: 2, 1, 2>, scalar_prefetch = 0 : i64, scratch_operands = 0 : i64, tpu.core_type = #tpu.core_type<tc>, window_params = [{transform_indices = @transform_0, window_bounds = array<i64: 1, 8, 64>}, {transform_indices = @transform_1, window_bounds = array<i64: 192, 64>}, {transform_indices = @transform_2, window_bounds = array<i64: 1, 8, 192>}]} {
    %c0 = arith.constant 0 : index
    %c0_0 = arith.constant 0 : index
    %c0_1 = arith.constant 0 : index
    %0 = vector.load %arg3[%c0, %c0_0, %c0_1] : memref<1x8x64xf32, #tpu.memory_space<vmem>>, vector<1x8x64xf32>
    %1 = vector.shape_cast %0 : vector<1x8x64xf32> to vector<8x64xf32>
    %c0_2 = arith.constant 0 : index
    %c0_3 = arith.constant 0 : index
    %2 = vector.load %arg4[%c0_2, %c0_3] : memref<192x64xf32, #tpu.memory_space<vmem>>, vector<192x64xf32>
    %cst = arith.constant dense<0.000000e+00> : vector<8x192xf32>
    %3 = tpu.matmul %1, %2, %cst {dimension_numbers = #tpu.dot_dimension_numbers<[1], [1], [0], [0], [0, 0, 1, 0], [], []>} : vector<8x64xf32>, vector<192x64xf32>, vector<8x192xf32> -> vector<8x192xf32>
    %c0_4 = arith.constant 0 : index
    %c0_5 = arith.constant 0 : index
    %c0_6 = arith.constant 0 : index
    %4 = vector.load %arg5[%c0_4, %c0_5, %c0_6] : memref<1x8x192xf32, #tpu.memory_space<vmem>>, vector<1x8x192xf32>
    %5 = vector.shape_cast %4 : vector<1x8x192xf32> to vector<8x192xf32>
    %6 = vector.shape_cast %3 : vector<8x192xf32> to vector<1x8x192xf32>
    tpu.vector_store %arg5[%c0_4, %c0_5, %c0_6], %6 {strides = array<i32>} : memref<1x8x192xf32, #tpu.memory_space<vmem>>, vector<1x8x192xf32>,
    return
  }
  func.func @transform_0(%arg0: i32, %arg1: i32, %arg2: i32) -> (i32, i32, i32) {
    %c0_i32 = arith.constant 0 : i32
    %c0_i32_0 = arith.constant 0 : i32
    return %arg0, %arg2, %c0_i32 : i32, i32, i32
  }
  func.func @transform_1(%arg0: i32, %arg1: i32, %arg2: i32) -> (i32, i32) {
    %c0_i32 = arith.constant 0 : i32
    %c0_i32_0 = arith.constant 0 : i32
    return %arg1, %c0_i32 : i32, i32
  }
  func.func @transform_2(%arg0: i32, %arg1: i32, %arg2: i32) -> (i32, i32, i32) {
    %c0_i32 = arith.constant 0 : i32
    return %arg0, %arg2, %arg1 : i32, i32, i32
  }
}

</mosaic_0001>

<llo_original>
// kernel: tpu_custom_call.1
$region0: #{tpu_custom_call.1}
  #allocation0 [shape = 'u32[]', space=smem, size = 0x4, offset = 0x4, fixed_abs, tag = 'smem constant byte address 0x4 - core index']
  #allocation1 [shape = 'u32[144,128]{1,0:T(1,128)}', space=vmem, size = 0x12000, scoped, tag = 'internal scratch']
  %s0 = inlined_call_operand.vmem [shape: f32[2,16,64], index: 0, kind: input, shape index: {}]
  %s1 = inlined_call_operand.vmem [shape: f32[192,64], index: 1, kind: input, shape index: {}]
  %s2 = inlined_call_operand.hbm [shape: f32[2,16,192], index: 2, kind: output, shape index: {}]
  %s3 = sld [smem:[#allocation0]]
  $region41: #{tpu_custom_call.1} parent=0
    _
  %s5 = ssub.s32 1, %s3
  %s6 = scalar_select 0, %s5, %s3
  $region1: #{tpu_custom_call.1} parent=0
    #allocation2 [shape = 'u8[16384]{0}', space=vmem, size = 0x4000, scoped, tag = 'output window, operand 0']
    #allocation3 [shape = 's32[2]{0}', space=sflag, size = 0x8, scoped, tag = 'scoped memory for tpu_custom_call.1']
    %7 = vsyncpa [#allocation3], 0
    %s8 = scalar_lea.sflag [#allocation3], 1
    %9 = vsyncpa %s8, 0
    loop: start=0, step=1, limit=6
    $region2: #{tpu_custom_call.1} parent=1 // loop_pre_header
      _
    $region3: #{tpu_custom_call.1} parent=1 // loop_header
      %s11 = sphi 0, %s15
      %p12 = scmp.ge.s32.totalorder %s11, 6
      %s18 = sphi 0, %s37
      %s19 = sphi 0, %s33
      %s20 = sphi 0, %s29
      %s21 = sphi 0, %s18
      %s22 = sphi 0, %s19
      %s23 = sphi 0, %s20
      %s24 = sphi 0, %s21
      %s25 = sphi 0, %s22
      %s26 = sphi 0, %s23
      %s42 = sphi 0, %s44
      %s45 = sphi 0, %s42
      %s46 = sphi 0, %s45
      %s62 = sphi 0, %s46
      %s68 = sphi 0, %s70
      %s71 = sphi 0, %s68
      %s72 = sphi 0, %s71
      %s88 = sphi 0, %s72
      %s98 = sphi 0, %s100
      %s101 = sphi 0, %s98
      %s102 = sphi 0, %s101
      %s118 = sphi 0, %s102
    $region4: #{tpu_custom_call.1} parent=1 // loop_header_branch
      %14 = sbr.rel (%p12) target = $region8
    $region5: #{tpu_custom_call.1} parent=1 // loop_body
      %s16 = ssub.s32 %s11, 1
      %s17 = ssub.s32 %s11, 2
      %s27 = sadd.s32 1, %s20
      %p28 = scmp.ge.s32.totalorder %s27, 2
      %s29 = scalar_select %p28, 0, %s27
      %s30 = sadd.s32 1, %s19
      %s31 = scalar_select %p28, %s30, %s19
      %p32 = scmp.ge.s32.totalorder %s31, 1
      %s33 = scalar_select %p32, 0, %s31
      %s34 = sadd.s32 1, %s18
      %s35 = scalar_select %p32, %s34, %s18
      %p36 = scmp.ge.s32.totalorder %s35, 2
      %s37 = scalar_select %p36, 0, %s35
      %s38 = ssub.s32 %s18, %s37
      %s39 = ssub.s32 %s20, %s29
      %s40 = sor.u32 %s38, %s39
      %p41 = scmp.eq.s32.totalorder %s40, 0
      %s43 = sadd.s32 %s42, 1
      %s44 = scalar_select %p41, %s42, %s43
      %p47 = pneg %p41
      %p48 = scmp.eq.s32.totalorder %s11, 3
      %p49 = por %p47, %p48
      %p50 = scmp.ne.s32.totalorder %s42, %s45
      %p51 = scmp.eq.s32.totalorder %s11, 0
      %p52 = por %p50, %p51
      %p53 = scmp.ne.s32.totalorder %s42, %s45
      %p54 = scmp.eq.s32.totalorder %s16, 3
      %p55 = por %p53, %p54
      %p56 = scmp.ne.s32.totalorder %s45, %s46
      %p57 = scmp.eq.s32.totalorder %s16, 0
      %p58 = por %p56, %p57
      %p59 = scmp.ne.s32.totalorder %s45, %s46
      %p60 = scmp.eq.s32.totalorder %s17, 3
      %p61 = por %p59, %p60
      %p63 = scmp.ne.s32.totalorder %s46, %s62
      %p64 = scmp.eq.s32.totalorder %s17, 0
      %p65 = por %p63, %p64
      %s66 = ssub.s32 %s19, %s33
      %p67 = scmp.eq.s32.totalorder %s66, 0
      %s69 = sadd.s32 %s68, 1
      %s70 = scalar_select %p67, %s68, %s69
      %p73 = pneg %p67
      %p74 = scmp.eq.s32.totalorder %s11, 3
      %p75 = por %p73, %p74
      %p76 = scmp.ne.s32.totalorder %s68, %s71
      %p77 = scmp.eq.s32.totalorder %s11, 0
      %p78 = por %p76, %p77
      %p79 = scmp.ne.s32.totalorder %s68, %s71
      %p80 = scmp.eq.s32.totalorder %s16, 3
      %p81 = por %p79, %p80
      %p82 = scmp.ne.s32.totalorder %s71, %s72
      %p83 = scmp.eq.s32.totalorder %s16, 0
      %p84 = por %p82, %p83
      %p85 = scmp.ne.s32.totalorder %s71, %s72
      %p86 = scmp.eq.s32.totalorder %s17, 3
      %p87 = por %p85, %p86
      %p89 = scmp.ne.s32.totalorder %s72, %s88
      %p90 = scmp.eq.s32.totalorder %s17, 0
      %p91 = por %p89, %p90
      %s92 = ssub.s32 %s18, %s37
      %s93 = ssub.s32 %s20, %s29
      %s94 = sor.u32 %s92, %s93
      %s95 = ssub.s32 %s19, %s33
      %s96 = sor.u32 %s94, %s95
      %p97 = scmp.eq.s32.totalorder %s96, 0
      %s99 = sadd.s32 %s98, 1
      %s100 = scalar_select %p97, %s98, %s99
      %p103 = pneg %p97
      %p104 = scmp.eq.s32.totalorder %s11, 3
      %p105 = por %p103, %p104
      %p106 = scmp.ne.s32.totalorder %s98, %s101
      %p107 = scmp.eq.s32.totalorder %s11, 0
      %p108 = por %p106, %p107
      %p109 = scmp.ne.s32.totalorder %s98, %s101
      %p110 = scmp.eq.s32.totalorder %s16, 3
      %p111 = por %p109, %p110
      %p112 = scmp.ne.s32.totalorder %s101, %s102
      %p113 = scmp.eq.s32.totalorder %s16, 0
      %p114 = por %p112, %p113
      %p115 = scmp.ne.s32.totalorder %s101, %s102
      %p116 = scmp.eq.s32.totalorder %s17, 3
      %p117 = por %p115, %p116
      %p119 = scmp.ne.s32.totalorder %s102, %s118
      %p120 = scmp.eq.s32.totalorder %s17, 0
      %p121 = por %p119, %p120
      %p122 = scmp.le.s32.totalorder 1, %s11
      %p123 = scmp.lt.s32.totalorder %s11, 5
      %p124 = pnand %p122, %p123
      %p125 = pneg %p124
      // Predicated region
      $region9: #{tpu_custom_call.1} parent=5 // pred_check
        _
      $region10: #{tpu_custom_call.1} parent=5 // pred_check_branch
        %127 = sbr.rel (%p124) target = $region12
      $region11: #{tpu_custom_call.1} parent=5 // pred_region
        %s128 = ssub.s32 %s11, 1
        // Predicated region
        $region13: #{tpu_custom_call.1} parent=11 // pred_check
          %p129 = pneg %p84
        $region14: #{tpu_custom_call.1} parent=11 // pred_check_branch
          %131 = sbr.rel (%p129) target = $region16
        $region15: #{tpu_custom_call.1} parent=11 // pred_region
          %s132 = smul.u32 24, %s22
          %p133 = scmp.lt.s32.totalorder %s132, 23
          %s134 = scalar_select %p133, %s132, 23
          %s135 = smul.addr %s134, 8
          %s136 = scalar_lea.vmem %s1, %s135
          %s137 = smul.u32 24, %s22
        $region16: #{tpu_custom_call.1} parent=11 // pred_fallthru
          _
      $region12: #{tpu_custom_call.1} parent=5 // pred_fallthru
        _
      %p138 = scmp.lt.s32.totalorder %s11, 4
      // Predicated region
      $region17: #{tpu_custom_call.1} parent=5 // pred_check
        %p139 = pneg %p138
      $region18: #{tpu_custom_call.1} parent=5 // pred_check_branch
        %141 = sbr.rel (%p139) target = $region20
      $region19: #{tpu_custom_call.1} parent=5 // pred_region
        // Predicated region
        $region21: #{tpu_custom_call.1} parent=19 // pred_check
          %p142 = pneg %p52
        $region22: #{tpu_custom_call.1} parent=19 // pred_check_branch
          %144 = sbr.rel (%p142) target = $region24
        $region23: #{tpu_custom_call.1} parent=19 // pred_region
          %p145 = scmp.lt.s32.totalorder %s18, 1
          %s146 = scalar_select %p145, %s18, 1
          %p147 = scmp.lt.s32.totalorder %s20, 1
          %s148 = scalar_select %p147, %s20, 1
          %s149 = smul.addr %s146, 2
          %s150 = sadd.s32 %s148, %s149
          %s151 = smul.addr %s150, 8
          %s152 = scalar_lea.vmem %s0, %s151
        $region24: #{tpu_custom_call.1} parent=19 // pred_fallthru
          _
      $region20: #{tpu_custom_call.1} parent=5 // pred_fallthru
        _
      %p153 = scmp.le.s32.totalorder 1, %s11
      %p154 = scmp.lt.s32.totalorder %s11, 5
      %p155 = pnand %p153, %p154
      %p156 = pneg %p155
      // Predicated region
      $region25: #{tpu_custom_call.1} parent=5 // pred_check
        _
      $region26: #{tpu_custom_call.1} parent=5 // pred_check_branch
        %158 = sbr.rel (%p155) target = $region28
      $region27: #{tpu_custom_call.1} parent=5 // pred_region
        %s159 = ssub.s32 %s11, 1
        %p160 = scmp.lt.s32.totalorder %s21, 1
        %s161 = scalar_select %p160, %s21, 1
        %p162 = scmp.lt.s32.totalorder %s23, 1
        %s163 = scalar_select %p162, %s23, 1
        %s164 = smul.addr %s161, 2
        %s165 = sadd.s32 %s163, %s164
        %s166 = smul.addr %s165, 8
        %s167 = scalar_lea.vmem %s0, %s166
        %p168 = pneg %p58
        %p169 = pneg %p55
        %s170 = smul.u32 24, %s22
        %p171 = scmp.lt.s32.totalorder %s170, 23
        %s172 = scalar_select %p171, %s170, 23
        %s173 = smul.addr %s172, 8
        %s174 = scalar_lea.vmem %s1, %s173
        %p175 = pneg %p84
        %p176 = pneg %p81
        %p177 = pneg %p114
        %p178 = pneg %p111
        %s179 = sand.u32 %s101, 1
        %s180 = scalar_lea.sflag [#allocation3], %s179
        %s181 = sand.u32 %s101, 1
        %s182 = smul.addr %s181, 16
        %s183 = scalar_lea.vmem [#allocation2], %s182
        %p184 = scmp.lt.s32.totalorder %s21, 1
        %s185 = scalar_select %p184, %s21, 1
        %p186 = scmp.lt.s32.totalorder %s23, 1
        %s187 = scalar_select %p186, %s23, 1
        %s188 = smul.addr %s185, 2
        %s189 = sadd.s32 %s187, %s188
        %s190 = smul.addr %s189, 8
        %s191 = scalar_lea.vmem %s0, %s190
        %s192 = smul.u32 24, %s22
        %p193 = scmp.lt.s32.totalorder %s192, 23
        %s194 = scalar_select %p193, %s192, 23
        %s195 = smul.addr %s194, 8
        %s196 = scalar_lea.vmem %s1, %s195
        %s197 = smul.u32 24, %s22
        %s198 = smul.u32 2, %s22
        %v199 = vld [vmem:[%s191] sm:$0xff]
        %v200 = vld [vmem:[%s196] sm:$0xff]
        %v201 = vld [vmem:[%s196 + $0x8] sm:$0xff]
        %v202 = vld [vmem:[%s196 + $0x10] sm:$0xff]
        %v203 = vld [vmem:[%s196 + $0x18] sm:$0xff]
        %v204 = vld [vmem:[%s196 + $0x20] sm:$0xff]
        %v205 = vld [vmem:[%s196 + $0x28] sm:$0xff]
        %v206 = vld [vmem:[%s196 + $0x30] sm:$0xff]
        %v207 = vld [vmem:[%s196 + $0x38] sm:$0xff]
        %v208 = vld [vmem:[%s196 + $0x40] sm:$0xff]
        %v209 = vld [vmem:[%s196 + $0x48] sm:$0xff]
        %v210 = vld [vmem:[%s196 + $0x50] sm:$0xff]
        %v211 = vld [vmem:[%s196 + $0x58] sm:$0xff]
        %v212 = vld [vmem:[%s196 + $0x60] sm:$0xff]
        %v213 = vld [vmem:[%s196 + $0x68] sm:$0xff]
        %v214 = vld [vmem:[%s196 + $0x70] sm:$0xff]
        %v215 = vld [vmem:[%s196 + $0x78] sm:$0xff]
        %v216 = vld [vmem:[%s196 + $0x80] sm:$0xff]
        %v217 = vld [vmem:[%s196 + $0x88] sm:$0xff]
        %v218 = vld [vmem:[%s196 + $0x90] sm:$0xff]
        %v219 = vld [vmem:[%s196 + $0x98] sm:$0xff]
        %v220 = vld [vmem:[%s196 + $0xa0] sm:$0xff]
        %v221 = vld [vmem:[%s196 + $0xa8] sm:$0xff]
        %v222 = vld [vmem:[%s196 + $0xb0] sm:$0xff]
        %v223 = vld [vmem:[%s196 + $0xb8] sm:$0xff]
        %vm224 = vcmask 523264
        %v226 = vsel %vm224, %v199, 0
        %v229 = vsel %vm224, %v200, 0
        %v232 = vsel %vm224, %v201, 0
        %v235 = vsel %vm224, %v202, 0
        %v238 = vsel %vm224, %v203, 0
        %v241 = vsel %vm224, %v204, 0
        %v244 = vsel %vm224, %v205, 0
        %v247 = vsel %vm224, %v206, 0
        %v250 = vsel %vm224, %v207, 0
        %v253 = vsel %vm224, %v208, 0
        %v256 = vsel %vm224, %v209, 0
        %v259 = vsel %vm224, %v210, 0
        %v262 = vsel %vm224, %v211, 0
        %v265 = vsel %vm224, %v212, 0
        %v268 = vsel %vm224, %v213, 0
        %v271 = vsel %vm224, %v214, 0
        %v274 = vsel %vm224, %v215, 0
        %v277 = vsel %vm224, %v216, 0
        %v280 = vsel %vm224, %v217, 0
        %v283 = vsel %vm224, %v218, 0
        %v286 = vsel %vm224, %v219, 0
        %v289 = vsel %vm224, %v220, 0
        %v292 = vsel %vm224, %v221, 0
        %v295 = vsel %vm224, %v222, 0
        %v298 = vsel %vm224, %v223, 0
        %300 = vmatprep.subr.mxu0 0.0
        %301 = vmatpush1.xpose.msra.mxu0 %v229
        %302 = vmatprep.subr.mxu0 0.0
        %303 = vmatpush1.xpose.msra.mxu0 %v232
        %304 = vmatprep.subr.mxu0 0.0
        %305 = vmatpush1.xpose.msra.mxu0 %v235
        %306 = vmatprep.subr.mxu0 0.0
        %307 = vmatpush1.xpose.msra.mxu0 %v238
        %308 = vmatprep.subr.mxu0 0.0
        %309 = vmatpush1.xpose.msra.mxu0 %v241
        %310 = vmatprep.subr.mxu0 0.0
        %311 = vmatpush1.xpose.msra.mxu0 %v244
        %312 = vmatprep.subr.mxu0 0.0
        %313 = vmatpush1.xpose.msra.mxu0 %v247
        %314 = vmatprep.subr.mxu0 0.0
        %315 = vmatpush1.xpose.msra.mxu0 %v250
        %316 = vmatprep.subr.mxu0 0.0
        %317 = vmatpush1.xpose.msra.mxu0 %v253
        %318 = vmatprep.subr.mxu0 0.0
        %319 = vmatpush1.xpose.msra.mxu0 %v256
        %320 = vmatprep.subr.mxu0 0.0
        %321 = vmatpush1.xpose.msra.mxu0 %v259
        %322 = vmatprep.subr.mxu0 0.0
        %323 = vmatpush1.xpose.msra.mxu0 %v262
        %324 = vmatprep.subr.mxu0 0.0
        %325 = vmatpush1.xpose.msra.mxu0 %v265
        %326 = vmatprep.subr.mxu0 0.0
        %327 = vmatpush1.xpose.msra.mxu0 %v268
        %328 = vmatprep.subr.mxu0 0.0
        %329 = vmatpush1.xpose.msra.mxu0 %v271
        %330 = vmatprep.subr.mxu0 0.0
        %331 = vmatpush1.xpose.msra.mxu0 %v274
        %332 = vmatprep.subr.mxu0 0.0
        %333 = vmatpush1.xpose.msra.mxu0 %v277
        %334 = vmatprep.subr.mxu0 0.0
        %335 = vmatpush1.xpose.msra.mxu0 %v280
        %336 = vmatprep.subr.mxu0 0.0
        %337 = vmatpush1.xpose.msra.mxu0 %v283
        %338 = vmatprep.subr.mxu0 0.0
        %339 = vmatpush1.xpose.msra.mxu0 %v286
        %340 = vmatprep.subr.mxu0 0.0
        %341 = vmatpush1.xpose.msra.mxu0 %v289
        %342 = vmatprep.subr.mxu0 0.0
        %343 = vmatpush1.xpose.msra.mxu0 %v292
        %344 = vmatprep.subr.mxu0 0.0
        %345 = vmatpush1.xpose.msra.mxu0 %v295
        %346 = vmatprep.subr.mxu0 0.0
        %347 = vmatpush1.xpose.msra.mxu0 %v298
        %348 = vmatprep.subr.mxu0 0.0
        %349 = vmatpush1.xpose.msra.mxu0 0.0
        %350 = vmatprep.subr.mxu0 0.0
        %351 = vmatpush1.xpose.msra.mxu0 0.0
        %352 = vmatprep.subr.mxu0 0.0
        %353 = vmatpush1.xpose.msra.mxu0 0.0
        %354 = vmatprep.subr.mxu0 0.0
        %355 = vmatpush1.xpose.msra.mxu0 0.0
        %356 = vmatprep.subr.mxu0 0.0
        %357 = vmatpush1.xpose.msra.mxu0 0.0
        %358 = vmatprep.subr.mxu0 0.0
        %359 = vmatpush1.xpose.msra.mxu0 0.0
        %360 = vmatprep.subr.mxu0 0.0
        %361 = vmatpush1.xpose.msra.mxu0 0.0
        %362 = vmatprep.subr.mxu0 0.0
        %363 = vmatpush1.xpose.msra.mxu0 0.0
        %364 = vmatprep.mubr.f32.mxu0 0.0
        %365 = vmatmul.mubr.f32.gmra.mrb[0].mxu0 %v226
        %v366 = vpop.f32.mrb[0].mxu0
        %v367 = vadd.f32 0.0, %v366
        %v368 = vpop.f32.mrb[0].mxu0
        %v369 = vadd.f32 0.0, %v368
        %370 = vdwg.mxu0
        %371 = vst [vmem:[%s183] sm:$0xff] %v367
        %372 = vst.msk [vmem:[%s183 + $0x8] sm:$0xff] %vm224, %v369
        %s373 = sand.u32 %s101, 1
        %s374 = scalar_lea.sflag [#allocation3], %s373
        %s375 = sand.u32 %s101, 1
        %s376 = smul.addr %s375, 16
        %s377 = scalar_lea.vmem [#allocation2], %s376
        // Predicated region
        $region29: #{tpu_custom_call.1} parent=27 // pred_check
          %p378 = pneg %p111
        $region30: #{tpu_custom_call.1} parent=27 // pred_check_branch
          %380 = sbr.rel (%p378) target = $region32
        $region31: #{tpu_custom_call.1} parent=27 // pred_region
          %s381 = smul.u32 2, %s22
          %s383 = ssub.s32 256, 256
          %384 = vsyncadd %s374, %s383
          %s385 = smul.addr %s23, 2
          %s386 = sadd.s32 %s381, %s385
          %s387 = smul.addr %s21, 4
          %s388 = sadd.s32 %s386, %s387
          %s389 = smul.addr %s388, 128
          %s390 = scalar_lea.hbm %s2, %s389
          %s392 = sshll.u32 %s377, 4
          %s393 = int_to_ptr.vmem [resolvable:$true] %s392
          %395 = dma.vmem_to_hbm [thread:$0]  %s393, 256, %s390, %s374
        $region32: #{tpu_custom_call.1} parent=27 // pred_fallthru
          _
      $region28: #{tpu_custom_call.1} parent=5 // pred_fallthru
        _
      %p396 = scmp.le.s32.totalorder 2, %s11
      // Predicated region
      $region33: #{tpu_custom_call.1} parent=5 // pred_check
        %p397 = pneg %p396
      $region34: #{tpu_custom_call.1} parent=5 // pred_check_branch
        %399 = sbr.rel (%p397) target = $region36
      $region35: #{tpu_custom_call.1} parent=5 // pred_region
        %s400 = ssub.s32 %s11, 2
        // Predicated region
        $region37: #{tpu_custom_call.1} parent=35 // pred_check
          %p401 = pneg %p117
        $region38: #{tpu_custom_call.1} parent=35 // pred_check_branch
          %403 = sbr.rel (%p401) target = $region40
        $region39: #{tpu_custom_call.1} parent=35 // pred_region
          %s404 = sand.u32 %s102, 1
          %s405 = scalar_lea.sflag [#allocation3], %s404
          %s406 = sand.u32 %s102, 1
          %s407 = smul.addr %s406, 16
          %s408 = scalar_lea.vmem [#allocation2], %s407
          %409 = dma.done %s405, 256
        $region40: #{tpu_custom_call.1} parent=35 // pred_fallthru
          _
      $region36: #{tpu_custom_call.1} parent=5 // pred_fallthru
        _
    $region6: #{tpu_custom_call.1} parent=1 // loop_footer
      %s15 = sadd.s32 1, %s11
    $region7: #{tpu_custom_call.1} parent=1 // loop_footer_branch
      %10 = sbr.rel target = $region3
    $region8: #{tpu_custom_call.1} parent=1 // loop_exit
      _
    %410 = vsyncpa [#allocation3], 1
    %s411 = scalar_lea.sflag [#allocation3], 1
    %412 = vsyncpa %s411, 1

</llo_original>
